<compile_context>
chip_gen: v7x
topology: tpu7x:2x2x1
jax: 0.10.0
libtpu: 0.0.40
codegen_flags: <defaults>
</compile_context>

<pallas_src>
import functools

import jax
import jax.numpy as jnp
from jax.experimental import pallas as pl
from jax.experimental.pallas import tpu as pltpu

_LANE = 128
_SUBLANE = 8


def _round_up(n, m):
    return ((n + m - 1) // m) * m


def agent_kernel(x_ref, w1_ref, b1_ref, w2_ref, b2_ref, o_ref, *, a_size):
    # fc1 + ReLU (MXU matmul, f32 accumulation).
    h = jnp.dot(x_ref[...], w1_ref[...], preferred_element_type=jnp.float32)
    h = jnp.maximum(h + b1_ref[...], 0.0)

    # fc2 logits over the 8-lane padded action axis.  Padded action lanes carry a
    # -1e30 bias -> exp underflows to 0, so the softmax equals softmax over the
    # real `a_size` lanes.
    logits = jnp.dot(h, w2_ref[...], preferred_element_type=jnp.float32) + b2_ref[...]

    # Numerically-stable softmax; exact normalization (negligible cost at (TB, 8)).
    m = jnp.max(logits, axis=-1, keepdims=True)
    e = jnp.exp(logits - m)
    denom = jnp.sum(e, axis=-1, keepdims=True)
    probs = e / denom

    # Store only the real action columns -> minimal HBM writeback.
    o_ref[...] = probs[:, :a_size].astype(o_ref.dtype)


def prepare_params(w1, b1, w2, b2):
    """Pad weights/biases once (init-time), off the per-call hot path.

    w1: (S, H); b1: (H,); w2: (H, A); b2: (A,).
    Hidden dim is zero-padded to 128 lanes (exact through ReLU); action dim is
    padded to 8 lanes with a -1e30 bias on padded columns (exact softmax).
    """
    w1 = jnp.asarray(w1, jnp.float32)
    b1 = jnp.asarray(b1, jnp.float32)
    w2 = jnp.asarray(w2, jnp.float32)
    b2 = jnp.asarray(b2, jnp.float32)
    S, H = w1.shape
    A = w2.shape[1]

    H_pad = _round_up(H, _LANE)
    A_pad = _round_up(A, _SUBLANE)

    w1p = jnp.zeros((S, H_pad), jnp.float32).at[:, :H].set(w1)
    b1p = jnp.zeros((1, H_pad), jnp.float32).at[:, :H].set(jnp.reshape(b1, (1, H)))
    w2p = jnp.zeros((H_pad, A_pad), jnp.float32).at[:H, :A].set(w2)
    b2p = jnp.full((1, A_pad), -1e30, jnp.float32).at[:, :A].set(jnp.reshape(b2, (1, A)))
    return {"w1": w1p, "b1": b1p, "w2": w2p, "b2": b2p, "a_size": A}


def agent_forward(x, params, *, block_rows=1024):
    """x: (B, s_size) or (s_size,) f32; params from `prepare_params`.
    Returns softmax action probabilities, shape (B, a_size) (or (a_size,))."""
    w1p, b1p, w2p, b2p = params["w1"], params["b1"], params["w2"], params["b2"]
    A = params["a_size"]

    x = jnp.asarray(x, jnp.float32)
    squeeze = x.ndim == 1
    if squeeze:  # single-state call, like Agent.forward(state) in evaluate()
        x = x[None, :]
    B, S = x.shape
    H_pad = w1p.shape[1]
    A_pad = w2p.shape[1]

    # --- batch grid: balance blocks instead of padding up to a full block. ---
    nblocks = max(1, -(-B // block_rows))
    if B >= 2 * _SUBLANE:
        nblocks = max(nblocks, 2)  # keep >=2 grid steps so v7x megacore gets both cores
    if nblocks == 1:
        TB = B  # block dim == full array dim is always legal; no padding needed
        B_pad = B
    else:
        TB = _round_up(-(-B // nblocks), _SUBLANE)
        B_pad = nblocks * TB
    xin = x if B_pad == B else jnp.pad(x, ((0, B_pad - B), (0, 0)))

    flops = 2 * B_pad * (S * H_pad + H_pad * A_pad)
    transcendentals = B_pad * A_pad  # exp per (padded) logit
    bytes_accessed = 4 * (B_pad * S + S * H_pad + H_pad
                          + H_pad * A_pad + A_pad + B_pad * A)

    kernel = functools.partial(agent_kernel, a_size=A)

    out = pl.pallas_call(
        kernel,
        out_shape=jax.ShapeDtypeStruct((B_pad, A), jnp.float32),
        grid=(nblocks,),
        in_specs=[
            pl.BlockSpec((TB, S), lambda i: (i, 0)),          # x: batch-tiled
            pl.BlockSpec((S, H_pad), lambda i: (0, 0)),       # w1: resident
            pl.BlockSpec((1, H_pad), lambda i: (0, 0)),       # b1: resident
            pl.BlockSpec((H_pad, A_pad), lambda i: (0, 0)),   # w2: resident
            pl.BlockSpec((1, A_pad), lambda i: (0, 0)),       # b2: resident
        ],
        out_specs=pl.BlockSpec((TB, A), lambda i: (i, 0)),    # narrow output: only real A cols
        compiler_params=pltpu.CompilerParams(
            dimension_semantics=("parallel",)),               # megacore split on v7x
        cost_estimate=pl.CostEstimate(
            flops=flops, transcendentals=transcendentals,
            bytes_accessed=bytes_accessed),
    )(xin, w1p, b1p, w2p, b2p)

    if B_pad != B:
        out = out[:B]
    return out[0] if squeeze else out


def init_params(key, s_size, h_size, a_size):
    """Deterministic parameter init (uniform, like nn.Linear's default range)."""
    k1, k2, k3, k4 = jax.random.split(key, 4)
    lim1 = 1.0 / jnp.sqrt(s_size)
    lim2 = 1.0 / jnp.sqrt(h_size)
    w1 = jax.random.uniform(k1, (s_size, h_size), jnp.float32, -lim1, lim1)
    b1 = jax.random.uniform(k2, (h_size,), jnp.float32, -lim1, lim1)
    w2 = jax.random.uniform(k3, (h_size, a_size), jnp.float32, -lim2, lim2)
    b2 = jax.random.uniform(k4, (a_size,), jnp.float32, -lim2, lim2)
    return w1, b1, w2, b2


def _reference(x, w1, b1, w2, b2):
    h = jnp.maximum(x @ w1 + b1[None, :], 0.0)
    return jax.nn.softmax(h @ w2 + b2[None, :], axis=-1)


if __name__ == "__main__":
    # CartPole-like shapes: s_size=4, h_size=16, a_size=2.
    B, S, H, A = 2, 4, 16, 2

    key = jax.random.PRNGKey(0)
    kx, kp, kx2, kx3 = jax.random.split(key, 4)
    x = jax.random.normal(kx, (B, S), jnp.float32)
    w1, b1, w2, b2 = init_params(kp, S, H, A)
    params = prepare_params(w1, b1, w2, b2)  # pad once, off the hot path

    # Small-batch run (the module's typical tiny-batch use).
    probs = jax.block_until_ready(agent_forward(x, params))
    ref = _reference(x, w1, b1, w2, b2)
    assert probs.shape == (B, A)
    assert jnp.allclose(probs, ref, atol=2e-3), (probs, ref)
    assert jnp.allclose(jnp.sum(probs, axis=-1), 1.0, atol=1e-5)

    # Single-state (1-D) call, like Agent.forward(state) inside evaluate().
    probs1 = jax.block_until_ready(agent_forward(x[0], params))
    assert probs1.shape == (A,)
    assert jnp.allclose(probs1, ref[0], atol=2e-3)

    # Large-batch run: multi-step, double-buffered batch grid (vectorized rollouts).
    B2 = 2048
    x2 = jax.random.normal(kx2, (B2, S), jnp.float32)
    probs2 = jax.block_until_ready(agent_forward(x2, params))
    ref2 = _reference(x2, w1, b1, w2, b2)
    assert probs2.shape == (B2, A)
    assert jnp.allclose(probs2, ref2, atol=2e-3)
    assert jnp.allclose(jnp.sum(probs2, axis=-1), 1.0, atol=1e-5)

    # Odd batch: exercises the balanced-tail blocking + minimal row padding path.
    B3 = 600
    x3 = jax.random.normal(kx3, (B3, S), jnp.float32)
    probs3 = jax.block_until_ready(agent_forward(x3, params))
    ref3 = _reference(x3, w1, b1, w2, b2)
    assert probs3.shape == (B3, A)
    assert jnp.allclose(probs3, ref3, atol=2e-3)

    print("KERNEL_OK")
</pallas_src>

<mosaic_0001>
module attributes {stable_mosaic.version = 11 : i64} {
  func.func @agent_kernel(%arg0: i32, %arg1: memref<2x4xf32, #tpu.memory_space<vmem>>, %arg2: memref<4x128xf32, #tpu.memory_space<vmem>>, %arg3: memref<1x128xf32, #tpu.memory_space<vmem>>, %arg4: memref<128x8xf32, #tpu.memory_space<vmem>>, %arg5: memref<1x8xf32, #tpu.memory_space<vmem>>, %arg6: memref<2x2xf32, #tpu.memory_space<vmem>>) attributes {dimension_semantics = [#tpu.dimension_semantics<parallel>], iteration_bounds = array<i64: 1>, scalar_prefetch = 0 : i64, scratch_operands = 0 : i64, tpu.core_type = #tpu.core_type<tc>, window_params = [{transform_indices = @transform_0, window_bounds = array<i64: 2, 4>}, {pipeline_mode = #tpu.pipeline_mode<synchronous>, transform_indices = @transform_1, window_bounds = array<i64: 4, 128>}, {pipeline_mode = #tpu.pipeline_mode<synchronous>, transform_indices = @transform_2, window_bounds = array<i64: 1, 128>}, {pipeline_mode = #tpu.pipeline_mode<synchronous>, transform_indices = @transform_3, window_bounds = array<i64: 128, 8>}, {pipeline_mode = #tpu.pipeline_mode<synchronous>, transform_indices = @transform_4, window_bounds = array<i64: 1, 8>}, {transform_indices = @transform_5, window_bounds = array<i64: 2, 2>}]} {
    %c0 = arith.constant 0 : index
    %c0_0 = arith.constant 0 : index
    %0 = vector.load %arg1[%c0, %c0_0] : memref<2x4xf32, #tpu.memory_space<vmem>>, vector<2x4xf32>
    %c0_1 = arith.constant 0 : index
    %c0_2 = arith.constant 0 : index
    %1 = vector.load %arg2[%c0_1, %c0_2] : memref<4x128xf32, #tpu.memory_space<vmem>>, vector<4x128xf32>
    %cst = arith.constant dense<0.000000e+00> : vector<2x128xf32>
    %2 = tpu.matmul %0, %1, %cst {dimension_numbers = #tpu.dot_dimension_numbers<[1], [0], [0], [1], [0, 0, 1, 1], [], []>} : vector<2x4xf32>, vector<4x128xf32>, vector<2x128xf32> -> vector<2x128xf32>
    %c0_3 = arith.constant 0 : index
    %c0_4 = arith.constant 0 : index
    %3 = vector.load %arg3[%c0_3, %c0_4] : memref<1x128xf32, #tpu.memory_space<vmem>>, vector<1x128xf32>
    %4 = vector.broadcast %3 : vector<1x128xf32> to vector<2x128xf32>
    %5 = arith.addf %2, %4 : vector<2x128xf32>
    %cst_5 = arith.constant 0.000000e+00 : f32
    %6 = vector.broadcast %cst_5 : f32 to vector<2x128xf32>
    %7 = arith.maximumf %5, %6 : vector<2x128xf32>
    %c0_6 = arith.constant 0 : index
    %c0_7 = arith.constant 0 : index
    %8 = vector.load %arg4[%c0_6, %c0_7] : memref<128x8xf32, #tpu.memory_space<vmem>>, vector<128x8xf32>
    %cst_8 = arith.constant dense<0.000000e+00> : vector<2x8xf32>
    %9 = tpu.matmul %7, %8, %cst_8 {dimension_numbers = #tpu.dot_dimension_numbers<[1], [0], [0], [1], [0, 0, 1, 1], [], []>} : vector<2x128xf32>, vector<128x8xf32>, vector<2x8xf32> -> vector<2x8xf32>
    %c0_9 = arith.constant 0 : index
    %c0_10 = arith.constant 0 : index
    %10 = vector.load %arg5[%c0_9, %c0_10] : memref<1x8xf32, #tpu.memory_space<vmem>>, vector<1x8xf32>
    %11 = vector.broadcast %10 : vector<1x8xf32> to vector<2x8xf32>
    %12 = arith.addf %9, %11 : vector<2x8xf32>
    %cst_11 = arith.constant dense<0xFF800000> : vector<2xf32>
    %13 = vector.multi_reduction <maximumf>, %12, %cst_11 [1] : vector<2x8xf32> to vector<2xf32>
    %14 = vector.shape_cast %13 : vector<2xf32> to vector<2x1xf32>
    %15 = vector.broadcast %14 : vector<2x1xf32> to vector<2x8xf32>
    %16 = arith.subf %12, %15 : vector<2x8xf32>
    %17 = math.exp %16 : vector<2x8xf32>
    %cst_12 = arith.constant dense<0.000000e+00> : vector<2xf32>
    %18 = vector.multi_reduction <add>, %17, %cst_12 [1] : vector<2x8xf32> to vector<2xf32>
    %19 = vector.shape_cast %18 : vector<2xf32> to vector<2x1xf32>
    %20 = vector.broadcast %19 : vector<2x1xf32> to vector<2x8xf32>
    %21 = arith.divf %17, %20 : vector<2x8xf32>
    %22 = vector.extract_strided_slice %21 {offsets = [0, 0], sizes = [2, 2], strides = [1, 1]} : vector<2x8xf32> to vector<2x2xf32>
    %c0_13 = arith.constant 0 : index
    %c0_14 = arith.constant 0 : index
    %23 = vector.load %arg6[%c0_13, %c0_14] : memref<2x2xf32, #tpu.memory_space<vmem>>, vector<2x2xf32>
    tpu.vector_store %arg6[%c0_13, %c0_14], %22 {strides = array<i32>} : memref<2x2xf32, #tpu.memory_space<vmem>>, vector<2x2xf32>,
    return
  }
  func.func @transform_0(%arg0: i32) -> (i32, i32) {
    %c0_i32 = arith.constant 0 : i32
    %c0_i32_0 = arith.constant 0 : i32
    return %arg0, %c0_i32 : i32, i32
  }
  func.func @transform_1(%arg0: i32) -> (i32, i32) {
    %c0_i32 = arith.constant 0 : i32
    %c0_i32_0 = arith.constant 0 : i32
    %c0_i32_1 = arith.constant 0 : i32
    return %c0_i32, %c0_i32_0 : i32, i32
  }
  func.func @transform_2(%arg0: i32) -> (i32, i32) {
    %c0_i32 = arith.constant 0 : i32
    %c0_i32_0 = arith.constant 0 : i32
    %c0_i32_1 = arith.constant 0 : i32
    return %c0_i32, %c0_i32_0 : i32, i32
  }
  func.func @transform_3(%arg0: i32) -> (i32, i32) {
    %c0_i32 = arith.constant 0 : i32
    %c0_i32_0 = arith.constant 0 : i32
    %c0_i32_1 = arith.constant 0 : i32
    return %c0_i32, %c0_i32_0 : i32, i32
  }
  func.func @transform_4(%arg0: i32) -> (i32, i32) {
    %c0_i32 = arith.constant 0 : i32
    %c0_i32_0 = arith.constant 0 : i32
    %c0_i32_1 = arith.constant 0 : i32
    return %c0_i32, %c0_i32_0 : i32, i32
  }
  func.func @transform_5(%arg0: i32) -> (i32, i32) {
    %c0_i32 = arith.constant 0 : i32
    %c0_i32_0 = arith.constant 0 : i32
    return %arg0, %c0_i32 : i32, i32
  }
}

</mosaic_0001>

<llo_original>
// kernel: tpu_custom_call.1
$region0: #{tpu_custom_call.1}
  #allocation0 [shape = 'u32[]', space=smem, size = 0x4, offset = 0x4, fixed_abs, tag = 'smem constant byte address 0x4 - core index']
  #allocation1 [shape = 'u32[144,128]{1,0:T(1,128)}', space=vmem, size = 0x12000, scoped, tag = 'internal scratch']
  %s0 = inlined_call_operand.vmem [shape: f32[2,4], index: 0, kind: input, shape index: {}]
  %s1 = inlined_call_operand.vmem [shape: f32[4,128], index: 1, kind: input, shape index: {}]
  %s2 = inlined_call_operand.vmem [shape: f32[1,128], index: 2, kind: input, shape index: {}]
  %s3 = inlined_call_operand.vmem [shape: f32[128,8], index: 3, kind: input, shape index: {}]
  %s4 = inlined_call_operand.vmem [shape: f32[1,8], index: 4, kind: input, shape index: {}]
  %s5 = inlined_call_operand.hbm [shape: f32[2,2], index: 5, kind: output, shape index: {}]
  %s6 = sld [smem:[#allocation0]]
  $region30: #{tpu_custom_call.1} parent=0
    _
  %s8 = ssub.s32 1, %s6
  %s9 = scalar_select 0, %s8, %s6
  $region1: #{tpu_custom_call.1} parent=0
    #allocation2 [shape = 'u8[1024]{0}', space=vmem, size = 0x400, scoped, tag = 'output window, operand 0, single buffered']
    #allocation3 [shape = 's32[1]{0}', space=sflag, size = 0x4, scoped, tag = 'scoped memory for tpu_custom_call.1']
    %10 = vsyncpa [#allocation3], 0
    // Predicated region
    $region2: #{tpu_custom_call.1} parent=1 // pred_check
      _
    $region3: #{tpu_custom_call.1} parent=1 // pred_check_branch
      %12 = sbr.rel (0) target = $region5
    $region4: #{tpu_custom_call.1} parent=1 // pred_region
      _
    $region5: #{tpu_custom_call.1} parent=1 // pred_fallthru
      _
    // Predicated region
    $region6: #{tpu_custom_call.1} parent=1 // pred_check
      _
    $region7: #{tpu_custom_call.1} parent=1 // pred_check_branch
      %14 = sbr.rel (0) target = $region9
    $region8: #{tpu_custom_call.1} parent=1 // pred_region
      _
    $region9: #{tpu_custom_call.1} parent=1 // pred_fallthru
      _
    // Predicated region
    $region10: #{tpu_custom_call.1} parent=1 // pred_check
      _
    $region11: #{tpu_custom_call.1} parent=1 // pred_check_branch
      %16 = sbr.rel (0) target = $region13
    $region12: #{tpu_custom_call.1} parent=1 // pred_region
      _
    $region13: #{tpu_custom_call.1} parent=1 // pred_fallthru
      _
    // Predicated region
    $region14: #{tpu_custom_call.1} parent=1 // pred_check
      _
    $region15: #{tpu_custom_call.1} parent=1 // pred_check_branch
      %18 = sbr.rel (0) target = $region17
    $region16: #{tpu_custom_call.1} parent=1 // pred_region
      _
    $region17: #{tpu_custom_call.1} parent=1 // pred_fallthru
      _
    // Predicated region
    $region18: #{tpu_custom_call.1} parent=1 // pred_check
      _
    $region19: #{tpu_custom_call.1} parent=1 // pred_check_branch
      %20 = sbr.rel (0) target = $region21
    $region20: #{tpu_custom_call.1} parent=1 // pred_region
      _
    $region21: #{tpu_custom_call.1} parent=1 // pred_fallthru
      _
    %v21 = vld [vmem:[%s0] sm:$0x3]
    %v22 = vld [vmem:[%s1] sm:$0xf]
    %v23 = vld [vmem:[%s2] sm:$0x1]
    %v25 = vlaneseq
    %v26 = vshrl.u32 %v25, 7
    %v27 = vsub.s32 0, %v26
    %v28 = vrot.slane %v23, %v27
    %vm30 = vcmask 31744
    %v32 = vsel %vm30, %v21, 0
    %vm34 = vcmask 1043456
    %v36 = vsel %vm34, %v22, 0
    %38 = vmatprep.subr.mxu0 0.0
    %39 = vmatpush1.msra.mxu0 %v36
    %40 = vmatprep.subr.mxu0 0.0
    %41 = vmatpush1.msra.mxu0 0.0
    %42 = vmatprep.subr.mxu0 0.0
    %43 = vmatpush1.msra.mxu0 0.0
    %44 = vmatprep.subr.mxu0 0.0
    %45 = vmatpush1.msra.mxu0 0.0
    %46 = vmatprep.subr.mxu0 0.0
    %47 = vmatpush1.msra.mxu0 0.0
    %48 = vmatprep.subr.mxu0 0.0
    %49 = vmatpush1.msra.mxu0 0.0
    %50 = vmatprep.subr.mxu0 0.0
    %51 = vmatpush1.msra.mxu0 0.0
    %52 = vmatprep.subr.mxu0 0.0
    %53 = vmatpush1.msra.mxu0 0.0
    %54 = vmatprep.subr.mxu0 0.0
    %55 = vmatpush1.msra.mxu0 0.0
    %56 = vmatprep.subr.mxu0 0.0
    %57 = vmatpush1.msra.mxu0 0.0
    %58 = vmatprep.subr.mxu0 0.0
    %59 = vmatpush1.msra.mxu0 0.0
    %60 = vmatprep.subr.mxu0 0.0
    %61 = vmatpush1.msra.mxu0 0.0
    %62 = vmatprep.subr.mxu0 0.0
    %63 = vmatpush1.msra.mxu0 0.0
    %64 = vmatprep.subr.mxu0 0.0
    %65 = vmatpush1.msra.mxu0 0.0
    %66 = vmatprep.subr.mxu0 0.0
    %67 = vmatpush1.msra.mxu0 0.0
    %68 = vmatprep.subr.mxu0 0.0
    %69 = vmatpush1.msra.mxu0 0.0
    %70 = vmatprep.subr.mxu0 0.0
    %71 = vmatpush1.msra.mxu0 0.0
    %72 = vmatprep.subr.mxu0 0.0
    %73 = vmatpush1.msra.mxu0 0.0
    %74 = vmatprep.subr.mxu0 0.0
    %75 = vmatpush1.msra.mxu0 0.0
    %76 = vmatprep.subr.mxu0 0.0
    %77 = vmatpush1.msra.mxu0 0.0
    %78 = vmatprep.subr.mxu0 0.0
    %79 = vmatpush1.msra.mxu0 0.0
    %80 = vmatprep.subr.mxu0 0.0
    %81 = vmatpush1.msra.mxu0 0.0
    %82 = vmatprep.subr.mxu0 0.0
    %83 = vmatpush1.msra.mxu0 0.0
    %84 = vmatprep.subr.mxu0 0.0
    %85 = vmatpush1.msra.mxu0 0.0
    %86 = vmatprep.subr.mxu0 0.0
    %87 = vmatpush1.msra.mxu0 0.0
    %88 = vmatprep.subr.mxu0 0.0
    %89 = vmatpush1.msra.mxu0 0.0
    %90 = vmatprep.subr.mxu0 0.0
    %91 = vmatpush1.msra.mxu0 0.0
    %92 = vmatprep.subr.mxu0 0.0
    %93 = vmatpush1.msra.mxu0 0.0
    %94 = vmatprep.subr.mxu0 0.0
    %95 = vmatpush1.msra.mxu0 0.0
    %96 = vmatprep.subr.mxu0 0.0
    %97 = vmatpush1.msra.mxu0 0.0
    %98 = vmatprep.subr.mxu0 0.0
    %99 = vmatpush1.msra.mxu0 0.0
    %100 = vmatprep.subr.mxu0 0.0
    %101 = vmatpush1.msra.mxu0 0.0
    %102 = vmatprep.mubr.f32.mxu0 0.0
    %103 = vmatmul.mubr.f32.gmra.mrb[0].mxu0 %v32
    %v104 = vpop.f32.mrb[0].mxu0
    %v105 = vadd.f32 %v28, %v104
    %v106 = vpop.f32.mrb[0].mxu0
    %107 = vdwg.mxu0
    %v108 = vmax.f32 %v105, 0.0
    %v109 = vld [vmem:[%s3] sm:$0xff]
    %v110 = vld [vmem:[%s3 + $0x8] sm:$0xff]
    %v111 = vld [vmem:[%s3 + $0x10] sm:$0xff]
    %v112 = vld [vmem:[%s3 + $0x18] sm:$0xff]
    %v113 = vld [vmem:[%s3 + $0x20] sm:$0xff]
    %v114 = vld [vmem:[%s3 + $0x28] sm:$0xff]
    %v115 = vld [vmem:[%s3 + $0x30] sm:$0xff]
    %v116 = vld [vmem:[%s3 + $0x38] sm:$0xff]
    %v117 = vld [vmem:[%s3 + $0x40] sm:$0xff]
    %v118 = vld [vmem:[%s3 + $0x48] sm:$0xff]
    %v119 = vld [vmem:[%s3 + $0x50] sm:$0xff]
    %v120 = vld [vmem:[%s3 + $0x58] sm:$0xff]
    %v121 = vld [vmem:[%s3 + $0x60] sm:$0xff]
    %v122 = vld [vmem:[%s3 + $0x68] sm:$0xff]
    %v123 = vld [vmem:[%s3 + $0x70] sm:$0xff]
    %v124 = vld [vmem:[%s3 + $0x78] sm:$0xff]
    %v125 = vld [vmem:[%s4] sm:$0x1]
    %v127 = vlaneseq
    %v128 = vshrl.u32 %v127, 7
    %v129 = vsub.s32 0, %v128
    %v130 = vrot.slane %v125, %v129
    %132 = vmatprep.subr.mxu0 0.0
    %133 = vmatpush1.msra.mxu0 %v109
    %134 = vmatprep.subr.mxu0 0.0
    %135 = vmatpush1.msra.mxu0 %v110
    %136 = vmatprep.subr.mxu0 0.0
    %137 = vmatpush1.msra.mxu0 %v111
    %138 = vmatprep.subr.mxu0 0.0
    %139 = vmatpush1.msra.mxu0 %v112
    %140 = vmatprep.subr.mxu0 0.0
    %141 = vmatpush1.msra.mxu0 %v113
    %142 = vmatprep.subr.mxu0 0.0
    %143 = vmatpush1.msra.mxu0 %v114
    %144 = vmatprep.subr.mxu0 0.0
    %145 = vmatpush1.msra.mxu0 %v115
    %146 = vmatprep.subr.mxu0 0.0
    %147 = vmatpush1.msra.mxu0 %v116
    %148 = vmatprep.subr.mxu0 0.0
    %149 = vmatpush1.msra.mxu0 %v117
    %150 = vmatprep.subr.mxu0 0.0
    %151 = vmatpush1.msra.mxu0 %v118
    %152 = vmatprep.subr.mxu0 0.0
    %153 = vmatpush1.msra.mxu0 %v119
    %154 = vmatprep.subr.mxu0 0.0
    %155 = vmatpush1.msra.mxu0 %v120
    %156 = vmatprep.subr.mxu0 0.0
    %157 = vmatpush1.msra.mxu0 %v121
    %158 = vmatprep.subr.mxu0 0.0
    %159 = vmatpush1.msra.mxu0 %v122
    %160 = vmatprep.subr.mxu0 0.0
    %161 = vmatpush1.msra.mxu0 %v123
    %162 = vmatprep.subr.mxu0 0.0
    %163 = vmatpush1.msra.mxu0 %v124
    %164 = vmatprep.subr.mxu0 0.0
    %165 = vmatpush1.msra.mxu0 0.0
    %166 = vmatprep.subr.mxu0 0.0
    %167 = vmatpush1.msra.mxu0 0.0
    %168 = vmatprep.subr.mxu0 0.0
    %169 = vmatpush1.msra.mxu0 0.0
    %170 = vmatprep.subr.mxu0 0.0
    %171 = vmatpush1.msra.mxu0 0.0
    %172 = vmatprep.subr.mxu0 0.0
    %173 = vmatpush1.msra.mxu0 0.0
    %174 = vmatprep.subr.mxu0 0.0
    %175 = vmatpush1.msra.mxu0 0.0
    %176 = vmatprep.subr.mxu0 0.0
    %177 = vmatpush1.msra.mxu0 0.0
    %178 = vmatprep.subr.mxu0 0.0
    %179 = vmatpush1.msra.mxu0 0.0
    %180 = vmatprep.subr.mxu0 0.0
    %181 = vmatpush1.msra.mxu0 0.0
    %182 = vmatprep.subr.mxu0 0.0
    %183 = vmatpush1.msra.mxu0 0.0
    %184 = vmatprep.subr.mxu0 0.0
    %185 = vmatpush1.msra.mxu0 0.0
    %186 = vmatprep.subr.mxu0 0.0
    %187 = vmatpush1.msra.mxu0 0.0
    %188 = vmatprep.subr.mxu0 0.0
    %189 = vmatpush1.msra.mxu0 0.0
    %190 = vmatprep.subr.mxu0 0.0
    %191 = vmatpush1.msra.mxu0 0.0
    %192 = vmatprep.subr.mxu0 0.0
    %193 = vmatpush1.msra.mxu0 0.0
    %194 = vmatprep.subr.mxu0 0.0
    %195 = vmatpush1.msra.mxu0 0.0
    %196 = vmatprep.mubr.f32.mxu0 0.0
    %197 = vmatmul.mubr.f32.gmra.mrb[0].mxu0 %v108
    %v198 = vpop.f32.mrb[0].mxu0
    %v199 = vadd.f32 %v130, %v198
    %v200 = vpop.f32.mrb[0].mxu0
    %201 = vdwg.mxu0
    %vm202 = vcmask 58368
    %v203 = vsel %vm202, %v199, -inf
    %204 = vmax.xlane.f32.xlu0 %v203
    %v205 = vpop.xlane.xlu0 %204
    %v206 = vsub.f32 %v199, %v205
    %v207 = vmul.f32 %v206, 1.442695
    %v208 = vpow.pop %v207
    %v209 = vsel %vm202, %v208, 0.0
    %210 = vadd.xlane.f32.xlu0 %v209
    %v211 = vpop.xlane.xlu0 %210
    %v212 = vrcp.pop %v211
    %v213 = vmul.f32 %v208, %v212
    %vm214 = vcmask 9216
    %215 = vst.msk [vmem:[#allocation2] sm:$0x3] %vm214, %v213
    // Predicated region
    $region22: #{tpu_custom_call.1} parent=1 // pred_check
      _
    $region23: #{tpu_custom_call.1} parent=1 // pred_check_branch
      %217 = sbr.rel (0) target = $region25
    $region24: #{tpu_custom_call.1} parent=1 // pred_region
      %s219 = ssub.s32 32, 32
      %220 = vsyncadd [#allocation3], %s219
      %s222 = sshll.u32 [#allocation2], 4
      %s223 = int_to_ptr.vmem [resolvable:$true] %s222
      %225 = dma.vmem_to_hbm [thread:$0]  %s223, 32, %s5, [#allocation3]
    $region25: #{tpu_custom_call.1} parent=1 // pred_fallthru
      _
    // Predicated region
    $region26: #{tpu_custom_call.1} parent=1 // pred_check
      _
    $region27: #{tpu_custom_call.1} parent=1 // pred_check_branch
      %227 = sbr.rel (0) target = $region29
    $region28: #{tpu_custom_call.1} parent=1 // pred_region
      %228 = dma.done [#allocation3], 32
    $region29: #{tpu_custom_call.1} parent=1 // pred_fallthru
      _
    %229 = vsyncpa [#allocation3], 1

</llo_original>
